<compile_context>
chip_gen: v6e
topology: v6e:2x2x1
jax: 0.10.0
libtpu: 0.0.40
codegen_flags: <defaults>
</compile_context>

<pallas_src>
import functools

import jax
import jax.numpy as jnp
from jax.experimental import pallas as pl
from jax.experimental.pallas import tpu as pltpu


def _round_up(x, m):
    return (x + m - 1) // m * m


def _lag_insulator_kernel(scal_ref, gt_ref, w1_ref, b1_ref, w2_ref, coef_ref,
                          out_ref, *, pen_coef, pen_exp):
    gt = gt_ref[...]                                          # (D, TB) f32
    gsq = gt * gt

    # Per-sample reductions over D (sublane axis): mostly plain VPU adds,
    # results land lane-dense as (1, TB).
    sumsq = jnp.sum(gsq, axis=0, keepdims=True)               # (1, TB)
    lin = jnp.sum(gt * coef_ref[:, 0:1], axis=0, keepdims=True)
    quad = jnp.sum(gsq * coef_ref[:, 1:2], axis=0, keepdims=True)

    # --- Clip_Norm: one rsqrt, no sqrt / divides; guard padded zero rows ---
    sumsq_safe = jnp.maximum(sumsq, 1e-30)
    inv = jax.lax.rsqrt(sumsq_safe)
    scale = jnp.where(sumsq < 0.49, 0.7 * inv,
                      jnp.where(sumsq > 1.21, 1.1 * inv, 1.0))

    # --- P = relu(model(g_clipped)) -----------------------------------------
    # Layer 1 on the MXU with bf16 operands / f32 accumulation.
    gct = (gt * scale).astype(jnp.bfloat16)                   # (D, TB)
    h = jnp.maximum(
        jnp.dot(w1_ref[...], gct, preferred_element_type=jnp.float32)
        + b1_ref[...], 0.0)                                   # (H, TB) f32
    # Layer 2 (H -> 1) on the VPU: broadcast-multiply + sublane reduce.
    p_pre = jnp.sum(h * w2_ref[...], axis=0, keepdims=True) + scal_ref[1]
    P = jnp.maximum(p_pre, 0.0)                               # (1, TB)

    # --- H polynomial: linear/quadratic in clipped g == scale / scale^2 times
    #     the same sums over unclipped g, plus the 0.5*t0 constant -----------
    h_poly = lin * scale + quad * (scale * scale) + scal_ref[0]

    out_ref[...] = h_poly + pen_coef * P ** pen_exp           # (1, TB)


@functools.partial(jax.jit, static_argnames=("N", "penalty", "tile_b"))
def lag_insulator_forward(t, gt, w1, b1, w2, b2, *, N, penalty, tile_b=512):
    """Batched LagInsulator forward, batch in lanes.

    Args:
      t:  (3,) f32 couplings.
      gt: (D, B) f32 -- g stored transposed (one column per independent g).
      w1: (H, D) f32 first Linear weight (native nn.Linear layout).
      b1: (H,)   f32 first Linear bias.
      w2: (1, H) f32 second Linear weight (native nn.Linear layout).
      b2: scalar / (1,) / (1,1) second Linear bias.
      N, penalty: as in the PyTorch module (static).
      tile_b: samples per grid step (rounded to a multiple of 128).
    Returns (B,) f32: H + penalty[0] * P ** penalty[1] per column of gt.
    """
    D, B = gt.shape
    H = w1.shape[0]
    assert w1.shape == (H, D), w1.shape
    assert 5 * N + 1 < D, f"need D >= 5*N + 2 (got D={D}, N={N})"

    t = t.astype(jnp.float32)
    pen_coef = float(penalty[0])
    pen_exp_raw = penalty[1]
    pen_exp = (int(pen_exp_raw) if float(pen_exp_raw).is_integer()
               else float(pen_exp_raw))

    # Full-width polynomial coefficient columns (N is static, so the indices
    # are compile-time constants; no runtime gather of g).
    c_lin = (jnp.zeros((D,), jnp.float32)
             .at[3 * N].set(-t[1]).at[3 * N + 1].set(-t[1])
             .at[5 * N].set(-t[2]).at[5 * N + 1].set(t[2]))
    c_quad = (jnp.zeros((D,), jnp.float32)
              .at[0].set(-0.5 * t[0])
              .at[3 * N].set(-0.25 * t[0]).at[3 * N + 1].set(-0.25 * t[0])
              .at[5 * N].set(-0.25 * t[0]).at[5 * N + 1].set(-0.25 * t[0]))
    coef = jnp.stack([c_lin, c_quad], axis=1)                 # (D, 2)

    # SMEM scalars: [0.5 * t0, b2].
    b2s = jnp.asarray(b2, jnp.float32).reshape(())
    scal = jnp.stack([0.5 * t[0], b2s]).astype(jnp.float32)   # (2,)

    # Tile selection: lane-dense (multiple of 128); keep >= 2 grid steps when
    # the batch is big enough so both v7x TensorCores get work.
    lane = 128
    tile = max(lane, (int(tile_b) // lane) * lane)
    b_min = _round_up(B, lane)
    tile = min(tile, b_min)
    if b_min // tile < 2 and b_min // 2 >= lane:
        tile = max(lane, (b_min // 2) // lane * lane)
    b_pad = _round_up(B, tile)

    if b_pad != B:
        gt = jnp.pad(gt, ((0, 0), (0, b_pad - B)))

    w1_bf = w1.astype(jnp.bfloat16)                           # (H, D) bf16
    b1c = b1.reshape(H, 1).astype(jnp.float32)                # (H, 1)
    w2c = w2.reshape(H, 1).astype(jnp.float32)                # (H, 1)

    kernel = functools.partial(_lag_insulator_kernel,
                               pen_coef=pen_coef, pen_exp=pen_exp)

    cost = pl.CostEstimate(
        flops=int(2 * D * H * b_pad + 2 * H * b_pad + 12 * D * b_pad),
        transcendentals=int(b_pad),
        bytes_accessed=int(D * b_pad * 4 + D * H * 2 + 12 * H + 4 * b_pad))

    # VMEM budget with headroom (v7x: 64 MiB physical / 32 MiB default scoped).
    vmem_est = (2 * D * tile * 4            # gt double buffer
                + 3 * D * tile * 4          # gsq / gct / scaled temporaries
                + 2 * H * tile * 4          # h + layer-2 product
                + 2 * D * H * 2             # bf16 w1 (double buffered)
                + 2 * 2 * tile * 4          # output double buffer
                + (1 << 20))                # slack
    vmem_limit = int(min(max(vmem_est, 32 * 1024 * 1024), 56 * 1024 * 1024))

    out = pl.pallas_call(
        kernel,
        out_shape=jax.ShapeDtypeStruct((1, b_pad), jnp.float32),
        grid=(b_pad // tile,),
        in_specs=[
            pl.BlockSpec(memory_space=pltpu.MemorySpace.SMEM),   # scal (2,)
            pl.BlockSpec((D, tile), lambda i: (0, i)),           # gt
            pl.BlockSpec((H, D), lambda i: (0, 0)),              # w1 (bf16)
            pl.BlockSpec((H, 1), lambda i: (0, 0)),              # b1 column
            pl.BlockSpec((H, 1), lambda i: (0, 0)),              # w2 column
            pl.BlockSpec((D, 2), lambda i: (0, 0)),              # coef columns
        ],
        out_specs=pl.BlockSpec((1, tile), lambda i: (0, i)),
        compiler_params=pltpu.CompilerParams(
            dimension_semantics=("parallel",),
            vmem_limit_bytes=vmem_limit),
        cost_estimate=cost,
    )(scal, gt, w1_bf, b1c, w2c, coef)

    return out.reshape(b_pad)[:B]


def _reference(t, g, w1, b1, w2, b2, N, penalty):
    """Plain-JAX per-row (g is (B, D)) reference mirroring the PyTorch forward."""
    norm = jnp.sqrt(jnp.sum(g * g, axis=-1, keepdims=True))
    scale = jnp.where(norm < 0.7, 0.7 / norm,
                      jnp.where(norm > 1.1, 1.1 / norm, 1.0))
    gc = g * scale
    h = jnp.maximum(gc @ w1.T + b1, 0.0)
    P = jnp.maximum(h @ w2.T + jnp.reshape(b2, ()), 0.0)[:, 0]
    g0 = gc[:, 0]
    gA = gc[:, 3 * N]
    gA1 = gc[:, 3 * N + 1]
    gB = gc[:, 5 * N]
    gB1 = gc[:, 5 * N + 1]
    Hv = -(t[1] * (gA1 + gA) - t[2] * (gB1 - gB)) + t[0] * (
        0.5 - 0.5 * g0 ** 2 - 0.25 * gA1 ** 2 - 0.25 * gB1 ** 2
        - 0.25 * gA ** 2 - 0.25 * gB ** 2)
    return Hv + penalty[0] * P ** penalty[1]


if __name__ == "__main__":
    N = 8                     # spin-chain size parameter (needs D >= 5*N + 2)
    D = 128                   # length of the init vector g
    HID = 128                 # hidden width of the synthetic inner model
    B = 8                     # batch of independent g vectors
    penalty = (10.0, 2)       # (coefficient, exponent)

    key = jax.random.PRNGKey(0)
    kg, kw1, kb1, kw2, kb2 = jax.random.split(key, 5)

    g = (0.1 * jax.random.normal(kg, (B, D))).astype(jnp.float32)
    w1 = (0.05 * jax.random.normal(kw1, (HID, D))).astype(jnp.float32)
    b1 = (0.01 * jax.random.normal(kb1, (HID,))).astype(jnp.float32)
    w2 = (0.05 * jax.random.normal(kw2, (1, HID))).astype(jnp.float32)
    b2 = (0.01 * jax.random.normal(kb2, (1, 1))).astype(jnp.float32)
    t = jnp.array([1.0, 0.8, 0.6], dtype=jnp.float32)

    gt = jnp.asarray(g.T)     # kernel takes g stored column-per-sample (D, B)
    out = lag_insulator_forward(t, gt, w1, b1, w2, b2, N=N, penalty=penalty)
    out = jax.block_until_ready(out)

    ref = jax.block_until_ready(_reference(t, g, w1, b1, w2, b2, N, penalty))
    assert out.shape == (B,), out.shape
    # bf16 MXU operands (f32 accumulation) -> loosened tolerance vs f32 ref.
    assert jnp.allclose(out, ref, rtol=1e-2, atol=1e-2), (out, ref)

    print("KERNEL_OK")
</pallas_src>

<mosaic_0001>
module attributes {stable_mosaic.version = 11 : i64} {
  func.func @_lag_insulator_kernel(%arg0: i32, %arg1: memref<2xf32, #tpu.memory_space<smem>>, %arg2: memref<128x128xf32, #tpu.memory_space<vmem>>, %arg3: memref<128x128xbf16, #tpu.memory_space<vmem>>, %arg4: memref<128x1xf32, #tpu.memory_space<vmem>>, %arg5: memref<128x1xf32, #tpu.memory_space<vmem>>, %arg6: memref<128x2xf32, #tpu.memory_space<vmem>>, %arg7: memref<1x128xf32, #tpu.memory_space<vmem>>) attributes {dimension_semantics = [#tpu.dimension_semantics<parallel>], iteration_bounds = array<i64: 1>, scalar_prefetch = 0 : i64, scratch_operands = 0 : i64, tpu.core_type = #tpu.core_type<tc>, window_params = [{transform_indices = @transform_0, window_bounds = array<i64: 2>}, {transform_indices = @transform_1, window_bounds = array<i64: 128, 128>}, {pipeline_mode = #tpu.pipeline_mode<synchronous>, transform_indices = @transform_2, window_bounds = array<i64: 128, 128>}, {pipeline_mode = #tpu.pipeline_mode<synchronous>, transform_indices = @transform_3, window_bounds = array<i64: 128, 1>}, {pipeline_mode = #tpu.pipeline_mode<synchronous>, transform_indices = @transform_4, window_bounds = array<i64: 128, 1>}, {pipeline_mode = #tpu.pipeline_mode<synchronous>, transform_indices = @transform_5, window_bounds = array<i64: 128, 2>}, {transform_indices = @transform_6, window_bounds = array<i64: 1, 128>}]} {
    %c0 = arith.constant 0 : index
    %c0_0 = arith.constant 0 : index
    %0 = vector.load %arg2[%c0, %c0_0] : memref<128x128xf32, #tpu.memory_space<vmem>>, vector<128x128xf32>
    %1 = arith.mulf %0, %0 : vector<128x128xf32>
    %cst = arith.constant dense<0.000000e+00> : vector<128xf32>
    %2 = vector.multi_reduction <add>, %1, %cst [0] : vector<128x128xf32> to vector<128xf32>
    %3 = vector.shape_cast %2 : vector<128xf32> to vector<1x128xf32>
    %c0_1 = arith.constant 0 : index
    %c0_2 = arith.constant 0 : index
    %4 = vector.load %arg6[%c0_1, %c0_2] : memref<128x2xf32, #tpu.memory_space<vmem>>, vector<128x1xf32>
    %5 = vector.broadcast %4 : vector<128x1xf32> to vector<128x128xf32>
    %6 = arith.mulf %0, %5 : vector<128x128xf32>
    %cst_3 = arith.constant dense<0.000000e+00> : vector<128xf32>
    %7 = vector.multi_reduction <add>, %6, %cst_3 [0] : vector<128x128xf32> to vector<128xf32>
    %8 = vector.shape_cast %7 : vector<128xf32> to vector<1x128xf32>
    %c0_4 = arith.constant 0 : index
    %c1 = arith.constant 1 : index
    %9 = vector.load %arg6[%c0_4, %c1] : memref<128x2xf32, #tpu.memory_space<vmem>>, vector<128x1xf32>
    %10 = vector.broadcast %9 : vector<128x1xf32> to vector<128x128xf32>
    %11 = arith.mulf %1, %10 : vector<128x128xf32>
    %cst_5 = arith.constant dense<0.000000e+00> : vector<128xf32>
    %12 = vector.multi_reduction <add>, %11, %cst_5 [0] : vector<128x128xf32> to vector<128xf32>
    %13 = vector.shape_cast %12 : vector<128xf32> to vector<1x128xf32>
    %cst_6 = arith.constant 1.000000e-30 : f32
    %14 = vector.broadcast %cst_6 : f32 to vector<1x128xf32>
    %15 = arith.maximumf %3, %14 : vector<1x128xf32>
    %16 = math.rsqrt %15 : vector<1x128xf32>
    %cst_7 = arith.constant 4.900000e-01 : f32
    %17 = vector.broadcast %cst_7 : f32 to vector<1x128xf32>
    %18 = arith.cmpf olt, %3, %17 : vector<1x128xf32>
    %cst_8 = arith.constant 0.699999988 : f32
    %19 = vector.broadcast %cst_8 : f32 to vector<1x128xf32>
    %20 = arith.mulf %19, %16 : vector<1x128xf32>
    %cst_9 = arith.constant 1.210000e+00 : f32
    %21 = vector.broadcast %cst_9 : f32 to vector<1x128xf32>
    %22 = arith.cmpf ogt, %3, %21 : vector<1x128xf32>
    %cst_10 = arith.constant 1.100000e+00 : f32
    %23 = vector.broadcast %cst_10 : f32 to vector<1x128xf32>
    %24 = arith.mulf %23, %16 : vector<1x128xf32>
    %cst_11 = arith.constant 1.000000e+00 : f32
    %25 = vector.broadcast %cst_11 : f32 to vector<1x128xf32>
    %26 = arith.select %22, %24, %25 : vector<1x128xi1>, vector<1x128xf32>
    %27 = arith.select %18, %20, %26 : vector<1x128xi1>, vector<1x128xf32>
    %28 = vector.broadcast %27 : vector<1x128xf32> to vector<128x128xf32>
    %29 = arith.mulf %0, %28 : vector<128x128xf32>
    %30 = arith.truncf %29 : vector<128x128xf32> to vector<128x128xbf16>
    %c0_12 = arith.constant 0 : index
    %c0_13 = arith.constant 0 : index
    %31 = vector.load %arg3[%c0_12, %c0_13] : memref<128x128xbf16, #tpu.memory_space<vmem>>, vector<128x128xbf16>
    %cst_14 = arith.constant dense<0.000000e+00> : vector<128x128xf32>
    %32 = tpu.matmul %31, %30, %cst_14 {dimension_numbers = #tpu.dot_dimension_numbers<[1], [0], [0], [1], [0, 0, 1, 1], [], []>} : vector<128x128xbf16>, vector<128x128xbf16>, vector<128x128xf32> -> vector<128x128xf32>
    %c0_15 = arith.constant 0 : index
    %c0_16 = arith.constant 0 : index
    %33 = vector.load %arg4[%c0_15, %c0_16] : memref<128x1xf32, #tpu.memory_space<vmem>>, vector<128x1xf32>
    %34 = vector.broadcast %33 : vector<128x1xf32> to vector<128x128xf32>
    %35 = arith.addf %32, %34 : vector<128x128xf32>
    %cst_17 = arith.constant 0.000000e+00 : f32
    %36 = vector.broadcast %cst_17 : f32 to vector<128x128xf32>
    %37 = arith.maximumf %35, %36 : vector<128x128xf32>
    %c0_18 = arith.constant 0 : index
    %c0_19 = arith.constant 0 : index
    %38 = vector.load %arg5[%c0_18, %c0_19] : memref<128x1xf32, #tpu.memory_space<vmem>>, vector<128x1xf32>
    %39 = vector.broadcast %38 : vector<128x1xf32> to vector<128x128xf32>
    %40 = arith.mulf %37, %39 : vector<128x128xf32>
    %cst_20 = arith.constant dense<0.000000e+00> : vector<128xf32>
    %41 = vector.multi_reduction <add>, %40, %cst_20 [0] : vector<128x128xf32> to vector<128xf32>
    %42 = vector.shape_cast %41 : vector<128xf32> to vector<1x128xf32>
    %c1_21 = arith.constant 1 : index
    %43 = memref.load %arg1[%c1_21] : memref<2xf32, #tpu.memory_space<smem>>
    %44 = vector.broadcast %43 : f32 to vector<1x128xf32>
    %45 = arith.addf %42, %44 : vector<1x128xf32>
    %cst_22 = arith.constant 0.000000e+00 : f32
    %46 = vector.broadcast %cst_22 : f32 to vector<1x128xf32>
    %47 = arith.maximumf %45, %46 : vector<1x128xf32>
    %48 = arith.mulf %8, %27 : vector<1x128xf32>
    %49 = arith.mulf %27, %27 : vector<1x128xf32>
    %50 = arith.mulf %13, %49 : vector<1x128xf32>
    %51 = arith.addf %48, %50 : vector<1x128xf32>
    %c0_23 = arith.constant 0 : index
    %52 = memref.load %arg1[%c0_23] : memref<2xf32, #tpu.memory_space<smem>>
    %53 = vector.broadcast %52 : f32 to vector<1x128xf32>
    %54 = arith.addf %51, %53 : vector<1x128xf32>
    %55 = arith.mulf %47, %47 : vector<1x128xf32>
    %cst_24 = arith.constant 1.000000e+01 : f32
    %56 = vector.broadcast %cst_24 : f32 to vector<1x128xf32>
    %57 = arith.mulf %56, %55 : vector<1x128xf32>
    %58 = arith.addf %54, %57 : vector<1x128xf32>
    %c0_25 = arith.constant 0 : index
    %c0_26 = arith.constant 0 : index
    %59 = vector.load %arg7[%c0_25, %c0_26] : memref<1x128xf32, #tpu.memory_space<vmem>>, vector<1x128xf32>
    tpu.vector_store %arg7[%c0_25, %c0_26], %58 {strides = array<i32>} : memref<1x128xf32, #tpu.memory_space<vmem>>, vector<1x128xf32>,
    return
  }
  func.func @transform_0(%arg0: i32) -> i32 {
    %c0_i32 = arith.constant 0 : i32
    %c0_i32_0 = arith.constant 0 : i32
    return %c0_i32 : i32
  }
  func.func @transform_1(%arg0: i32) -> (i32, i32) {
    %c0_i32 = arith.constant 0 : i32
    %c0_i32_0 = arith.constant 0 : i32
    return %c0_i32, %arg0 : i32, i32
  }
  func.func @transform_2(%arg0: i32) -> (i32, i32) {
    %c0_i32 = arith.constant 0 : i32
    %c0_i32_0 = arith.constant 0 : i32
    %c0_i32_1 = arith.constant 0 : i32
    return %c0_i32, %c0_i32_0 : i32, i32
  }
  func.func @transform_3(%arg0: i32) -> (i32, i32) {
    %c0_i32 = arith.constant 0 : i32
    %c0_i32_0 = arith.constant 0 : i32
    %c0_i32_1 = arith.constant 0 : i32
    return %c0_i32, %c0_i32_0 : i32, i32
  }
  func.func @transform_4(%arg0: i32) -> (i32, i32) {
    %c0_i32 = arith.constant 0 : i32
    %c0_i32_0 = arith.constant 0 : i32
    %c0_i32_1 = arith.constant 0 : i32
    return %c0_i32, %c0_i32_0 : i32, i32
  }
  func.func @transform_5(%arg0: i32) -> (i32, i32) {
    %c0_i32 = arith.constant 0 : i32
    %c0_i32_0 = arith.constant 0 : i32
    %c0_i32_1 = arith.constant 0 : i32
    return %c0_i32, %c0_i32_0 : i32, i32
  }
  func.func @transform_6(%arg0: i32) -> (i32, i32) {
    %c0_i32 = arith.constant 0 : i32
    %c0_i32_0 = arith.constant 0 : i32
    return %c0_i32, %arg0 : i32, i32
  }
}

</mosaic_0001>

<llo_original>
// kernel: lag_insulator_forward.1
$region0: #{lag_insulator_forward.1}
  #allocation0 [shape = 'u32[]', space=smem, size = 0x4, offset = 0x4, fixed_abs, tag = 'smem constant byte address 0x4 - core index']
  #allocation1 [shape = 'u32[144,128]{1,0:T(1,128)}', space=vmem, size = 0x12000, scoped, tag = 'internal scratch']
  %s0 = inlined_call_operand.vmem [shape: f32[2], index: 0, kind: input, shape index: {}]
  %s1 = inlined_call_operand.vmem [shape: f32[128,128], index: 1, kind: input, shape index: {}]
  %s2 = inlined_call_operand.vmem [shape: bf16[128,128], index: 2, kind: input, shape index: {}]
  %s3 = inlined_call_operand.vmem [shape: f32[128,1], index: 3, kind: input, shape index: {}]
  %s4 = inlined_call_operand.vmem [shape: f32[128,1], index: 4, kind: input, shape index: {}]
  %s5 = inlined_call_operand.vmem [shape: f32[128,2], index: 5, kind: input, shape index: {}]
  %s6 = inlined_call_operand.vmem [shape: f32[1,128], index: 6, kind: output, shape index: {}]
  %s7 = sld [smem:[#allocation0]]
  $region38: #{lag_insulator_forward.1} parent=0
    _
  %s9 = ssub.s32 1, %s7
  %s10 = scalar_select 0, %s9, %s7
  $region1: #{lag_insulator_forward.1} parent=0
    #allocation2 [shape = 'u8[512]{0}', space=smem, size = 0x200, scoped, tag = 'input window, operand 0, single buffered']
    #allocation3 [shape = 's32[1]{0}', space=sflag, size = 0x4, scoped, tag = 'scoped memory for lag_insulator_forward.1']
    %11 = vsyncpa [#allocation3], 0
    // Predicated region
    $region2: #{lag_insulator_forward.1} parent=1 // pred_check
      _
    $region3: #{lag_insulator_forward.1} parent=1 // pred_check_branch
      %13 = sbr.rel (0) target = $region5
    $region4: #{lag_insulator_forward.1} parent=1 // pred_region
      %s15 = ssub.s32 16, 16
      %16 = vsyncadd [#allocation3], %s15
      %s18 = sshll.u32 %s0, 4
      %s19 = int_to_ptr.vmem [resolvable:$true] %s18
      %21 = dma.vmem_to_smem %s19, 16, [#allocation2], [#allocation3]
    $region5: #{lag_insulator_forward.1} parent=1 // pred_fallthru
      _
    // Predicated region
    $region6: #{lag_insulator_forward.1} parent=1 // pred_check
      _
    $region7: #{lag_insulator_forward.1} parent=1 // pred_check_branch
      %23 = sbr.rel (0) target = $region9
    $region8: #{lag_insulator_forward.1} parent=1 // pred_region
      _
    $region9: #{lag_insulator_forward.1} parent=1 // pred_fallthru
      _
    // Predicated region
    $region10: #{lag_insulator_forward.1} parent=1 // pred_check
      _
    $region11: #{lag_insulator_forward.1} parent=1 // pred_check_branch
      %25 = sbr.rel (0) target = $region13
    $region12: #{lag_insulator_forward.1} parent=1 // pred_region
      _
    $region13: #{lag_insulator_forward.1} parent=1 // pred_fallthru
      _
    // Predicated region
    $region14: #{lag_insulator_forward.1} parent=1 // pred_check
      _
    $region15: #{lag_insulator_forward.1} parent=1 // pred_check_branch
      %27 = sbr.rel (0) target = $region17
    $region16: #{lag_insulator_forward.1} parent=1 // pred_region
      _
    $region17: #{lag_insulator_forward.1} parent=1 // pred_fallthru
      _
    // Predicated region
    $region18: #{lag_insulator_forward.1} parent=1 // pred_check
      _
    $region19: #{lag_insulator_forward.1} parent=1 // pred_check_branch
      %29 = sbr.rel (0) target = $region21
    $region20: #{lag_insulator_forward.1} parent=1 // pred_region
      _
    $region21: #{lag_insulator_forward.1} parent=1 // pred_fallthru
      _
    // Predicated region
    $region22: #{lag_insulator_forward.1} parent=1 // pred_check
      _
    $region23: #{lag_insulator_forward.1} parent=1 // pred_check_branch
      %31 = sbr.rel (0) target = $region25
    $region24: #{lag_insulator_forward.1} parent=1 // pred_region
      _
    $region25: #{lag_insulator_forward.1} parent=1 // pred_fallthru
      _
    // Predicated region
    $region26: #{lag_insulator_forward.1} parent=1 // pred_check
      _
    $region27: #{lag_insulator_forward.1} parent=1 // pred_check_branch
      %33 = sbr.rel (0) target = $region29
    $region28: #{lag_insulator_forward.1} parent=1 // pred_region
      %34 = dma.done [#allocation3], 16
    $region29: #{lag_insulator_forward.1} parent=1 // pred_fallthru
      _
    %35 = sfence
    %v37 = vld [vmem:[%s1] sm:$0xff]
    %v38 = vld [vmem:[%s1 + $0x8] sm:$0xff]
    %v39 = vld [vmem:[%s1 + $0x10] sm:$0xff]
    %v40 = vld [vmem:[%s1 + $0x18] sm:$0xff]
    %v41 = vld [vmem:[%s1 + $0x20] sm:$0xff]
    %v42 = vld [vmem:[%s1 + $0x28] sm:$0xff]
    %v43 = vld [vmem:[%s1 + $0x30] sm:$0xff]
    %v44 = vld [vmem:[%s1 + $0x38] sm:$0xff]
    %v45 = vld [vmem:[%s1 + $0x40] sm:$0xff]
    %v46 = vld [vmem:[%s1 + $0x48] sm:$0xff]
    %v47 = vld [vmem:[%s1 + $0x50] sm:$0xff]
    %v48 = vld [vmem:[%s1 + $0x58] sm:$0xff]
    %v49 = vld [vmem:[%s1 + $0x60] sm:$0xff]
    %v50 = vld [vmem:[%s1 + $0x68] sm:$0xff]
    %v51 = vld [vmem:[%s1 + $0x70] sm:$0xff]
    %v52 = vld [vmem:[%s1 + $0x78] sm:$0xff]
    %v53 = vmul.f32 %v37, %v37
    %v54 = vmul.f32 %v38, %v38
    %v55 = vmul.f32 %v39, %v39
    %v56 = vmul.f32 %v40, %v40
    %v57 = vmul.f32 %v41, %v41
    %v58 = vmul.f32 %v42, %v42
    %v59 = vmul.f32 %v43, %v43
    %v60 = vmul.f32 %v44, %v44
    %v61 = vmul.f32 %v45, %v45
    %v62 = vmul.f32 %v46, %v46
    %v63 = vmul.f32 %v47, %v47
    %v64 = vmul.f32 %v48, %v48
    %v65 = vmul.f32 %v49, %v49
    %v66 = vmul.f32 %v50, %v50
    %v67 = vmul.f32 %v51, %v51
    %v68 = vmul.f32 %v52, %v52
    %v69 = vadd.f32 %v53, %v54
    %v70 = vadd.f32 %v69, %v55
    %v71 = vadd.f32 %v70, %v56
    %v72 = vadd.f32 %v71, %v57
    %v73 = vadd.f32 %v72, %v58
    %v74 = vadd.f32 %v73, %v59
    %v75 = vadd.f32 %v74, %v60
    %v76 = vadd.f32 %v75, %v61
    %v77 = vadd.f32 %v76, %v62
    %v78 = vadd.f32 %v77, %v63
    %v79 = vadd.f32 %v78, %v64
    %v80 = vadd.f32 %v79, %v65
    %v81 = vadd.f32 %v80, %v66
    %v82 = vadd.f32 %v81, %v67
    %v83 = vadd.f32 %v82, %v68
    %v84 = vrot.slane %v83, 4
    %v85 = vadd.f32 %v83, %v84
    %v86 = vrot.slane %v85, 2
    %v87 = vadd.f32 %v85, %v86
    %v88 = vrot.slane %v87, 1
    %v89 = vadd.f32 %v87, %v88
    %v90 = vld [vmem:[%s5] sm:$0xff]
    %v91 = vld [vmem:[%s5 + $0x8] sm:$0xff]
    %v92 = vld [vmem:[%s5 + $0x10] sm:$0xff]
    %v93 = vld [vmem:[%s5 + $0x18] sm:$0xff]
    %v94 = vld [vmem:[%s5 + $0x20] sm:$0xff]
    %v95 = vld [vmem:[%s5 + $0x28] sm:$0xff]
    %v96 = vld [vmem:[%s5 + $0x30] sm:$0xff]
    %v97 = vld [vmem:[%s5 + $0x38] sm:$0xff]
    %v98 = vld [vmem:[%s5 + $0x40] sm:$0xff]
    %v99 = vld [vmem:[%s5 + $0x48] sm:$0xff]
    %v100 = vld [vmem:[%s5 + $0x50] sm:$0xff]
    %v101 = vld [vmem:[%s5 + $0x58] sm:$0xff]
    %v102 = vld [vmem:[%s5 + $0x60] sm:$0xff]
    %v103 = vld [vmem:[%s5 + $0x68] sm:$0xff]
    %v104 = vld [vmem:[%s5 + $0x70] sm:$0xff]
    %v105 = vld [vmem:[%s5 + $0x78] sm:$0xff]
    %107 = vset.pattern.permute.xlu0 0
    %108 = vperm.xlu0 %107, %v90
    %v109 = vpop.permute.xlu0 %108
    %112 = vset.pattern.permute.xlu0 0
    %113 = vperm.xlu0 %112, %v91
    %v114 = vpop.permute.xlu0 %113
    %117 = vset.pattern.permute.xlu0 0
    %118 = vperm.xlu0 %117, %v92
    %v119 = vpop.permute.xlu0 %118
    %122 = vset.pattern.permute.xlu0 0
    %123 = vperm.xlu0 %122, %v93
    %v124 = vpop.permute.xlu0 %123
    %127 = vset.pattern.permute.xlu0 0
    %128 = vperm.xlu0 %127, %v94
    %v129 = vpop.permute.xlu0 %128
    %132 = vset.pattern.permute.xlu0 0
    %133 = vperm.xlu0 %132, %v95
    %v134 = vpop.permute.xlu0 %133
    %137 = vset.pattern.permute.xlu0 0
    %138 = vperm.xlu0 %137, %v96
    %v139 = vpop.permute.xlu0 %138
    %142 = vset.pattern.permute.xlu0 0
    %143 = vperm.xlu0 %142, %v97
    %v144 = vpop.permute.xlu0 %143
    %147 = vset.pattern.permute.xlu0 0
    %148 = vperm.xlu0 %147, %v98
    %v149 = vpop.permute.xlu0 %148
    %152 = vset.pattern.permute.xlu0 0
    %153 = vperm.xlu0 %152, %v99
    %v154 = vpop.permute.xlu0 %153
    %157 = vset.pattern.permute.xlu0 0
    %158 = vperm.xlu0 %157, %v100
    %v159 = vpop.permute.xlu0 %158
    %162 = vset.pattern.permute.xlu0 0
    %163 = vperm.xlu0 %162, %v101
    %v164 = vpop.permute.xlu0 %163
    %167 = vset.pattern.permute.xlu0 0
    %168 = vperm.xlu0 %167, %v102
    %v169 = vpop.permute.xlu0 %168
    %172 = vset.pattern.permute.xlu0 0
    %173 = vperm.xlu0 %172, %v103
    %v174 = vpop.permute.xlu0 %173
    %177 = vset.pattern.permute.xlu0 0
    %178 = vperm.xlu0 %177, %v104
    %v179 = vpop.permute.xlu0 %178
    %182 = vset.pattern.permute.xlu0 0
    %183 = vperm.xlu0 %182, %v105
    %v184 = vpop.permute.xlu0 %183
    %v186 = vmul.f32 %v37, %v109
    %v187 = vmul.f32 %v38, %v114
    %v188 = vmul.f32 %v39, %v119
    %v189 = vmul.f32 %v40, %v124
    %v190 = vmul.f32 %v41, %v129
    %v191 = vmul.f32 %v42, %v134
    %v192 = vmul.f32 %v43, %v139
    %v193 = vmul.f32 %v44, %v144
    %v194 = vmul.f32 %v45, %v149
    %v195 = vmul.f32 %v46, %v154
    %v196 = vmul.f32 %v47, %v159
    %v197 = vmul.f32 %v48, %v164
    %v198 = vmul.f32 %v49, %v169
    %v199 = vmul.f32 %v50, %v174
    %v200 = vmul.f32 %v51, %v179
    %v201 = vmul.f32 %v52, %v184
    %v202 = vadd.f32 %v186, %v187
    %v203 = vadd.f32 %v202, %v188
    %v204 = vadd.f32 %v203, %v189
    %v205 = vadd.f32 %v204, %v190
    %v206 = vadd.f32 %v205, %v191
    %v207 = vadd.f32 %v206, %v192
    %v208 = vadd.f32 %v207, %v193
    %v209 = vadd.f32 %v208, %v194
    %v210 = vadd.f32 %v209, %v195
    %v211 = vadd.f32 %v210, %v196
    %v212 = vadd.f32 %v211, %v197
    %v213 = vadd.f32 %v212, %v198
    %v214 = vadd.f32 %v213, %v199
    %v215 = vadd.f32 %v214, %v200
    %v216 = vadd.f32 %v215, %v201
    %v217 = vrot.slane %v216, 4
    %v218 = vadd.f32 %v216, %v217
    %v219 = vrot.slane %v218, 2
    %v220 = vadd.f32 %v218, %v219
    %v221 = vrot.slane %v220, 1
    %v222 = vadd.f32 %v220, %v221
    %223 = vset.pattern.permute.xlu0 1
    %224 = vperm.xlu0 %223, %v90
    %v225 = vpop.permute.xlu0 %224
    %227 = vset.pattern.permute.xlu0 1
    %228 = vperm.xlu0 %227, %v91
    %v229 = vpop.permute.xlu0 %228
    %231 = vset.pattern.permute.xlu0 1
    %232 = vperm.xlu0 %231, %v92
    %v233 = vpop.permute.xlu0 %232
    %235 = vset.pattern.permute.xlu0 1
    %236 = vperm.xlu0 %235, %v93
    %v237 = vpop.permute.xlu0 %236
    %239 = vset.pattern.permute.xlu0 1
    %240 = vperm.xlu0 %239, %v94
    %v241 = vpop.permute.xlu0 %240
    %243 = vset.pattern.permute.xlu0 1
    %244 = vperm.xlu0 %243, %v95
    %v245 = vpop.permute.xlu0 %244
    %247 = vset.pattern.permute.xlu0 1
    %248 = vperm.xlu0 %247, %v96
    %v249 = vpop.permute.xlu0 %248
    %251 = vset.pattern.permute.xlu0 1
    %252 = vperm.xlu0 %251, %v97
    %v253 = vpop.permute.xlu0 %252
    %255 = vset.pattern.permute.xlu0 1
    %256 = vperm.xlu0 %255, %v98
    %v257 = vpop.permute.xlu0 %256
    %259 = vset.pattern.permute.xlu0 1
    %260 = vperm.xlu0 %259, %v99
    %v261 = vpop.permute.xlu0 %260
    %263 = vset.pattern.permute.xlu0 1
    %264 = vperm.xlu0 %263, %v100
    %v265 = vpop.permute.xlu0 %264
    %267 = vset.pattern.permute.xlu0 1
    %268 = vperm.xlu0 %267, %v101
    %v269 = vpop.permute.xlu0 %268
    %271 = vset.pattern.permute.xlu0 1
    %272 = vperm.xlu0 %271, %v102
    %v273 = vpop.permute.xlu0 %272
    %275 = vset.pattern.permute.xlu0 1
    %276 = vperm.xlu0 %275, %v103
    %v277 = vpop.permute.xlu0 %276
    %279 = vset.pattern.permute.xlu0 1
    %280 = vperm.xlu0 %279, %v104
    %v281 = vpop.permute.xlu0 %280
    %283 = vset.pattern.permute.xlu0 1
    %284 = vperm.xlu0 %283, %v105
    %v285 = vpop.permute.xlu0 %284
    %v287 = vmul.f32 %v53, %v225
    %v288 = vmul.f32 %v54, %v229
    %v289 = vmul.f32 %v55, %v233
    %v290 = vmul.f32 %v56, %v237
    %v291 = vmul.f32 %v57, %v241
    %v292 = vmul.f32 %v58, %v245
    %v293 = vmul.f32 %v59, %v249
    %v294 = vmul.f32 %v60, %v253
    %v295 = vmul.f32 %v61, %v257
    %v296 = vmul.f32 %v62, %v261
    %v297 = vmul.f32 %v63, %v265
    %v298 = vmul.f32 %v64, %v269
    %v299 = vmul.f32 %v65, %v273
    %v300 = vmul.f32 %v66, %v277
    %v301 = vmul.f32 %v67, %v281
    %v302 = vmul.f32 %v68, %v285
    %v303 = vadd.f32 %v287, %v288
    %v304 = vadd.f32 %v303, %v289
    %v305 = vadd.f32 %v304, %v290
    %v306 = vadd.f32 %v305, %v291
    %v307 = vadd.f32 %v306, %v292
    %v308 = vadd.f32 %v307, %v293
    %v309 = vadd.f32 %v308, %v294
    %v310 = vadd.f32 %v309, %v295
    %v311 = vadd.f32 %v310, %v296
    %v312 = vadd.f32 %v311, %v297
    %v313 = vadd.f32 %v312, %v298
    %v314 = vadd.f32 %v313, %v299
    %v315 = vadd.f32 %v314, %v300
    %v316 = vadd.f32 %v315, %v301
    %v317 = vadd.f32 %v316, %v302
    %v318 = vrot.slane %v317, 4
    %v319 = vadd.f32 %v317, %v318
    %v320 = vrot.slane %v319, 2
    %v321 = vadd.f32 %v319, %v320
    %v322 = vrot.slane %v321, 1
    %v323 = vadd.f32 %v321, %v322
    %v324 = vmax.f32 %v89, 1e-30
    %v325 = vrsqrt.pop %v324
    %vm326 = vcmp.lt.f32.partialorder %v89, 0.49
    %v327 = vmul.f32 %v325, 0.7
    %vm328 = vcmp.gt.f32.partialorder %v89, 1.21
    %v329 = vmul.f32 %v325, 1.1
    %v330 = vsel %vm328, %v329, 1.0
    %v331 = vsel %vm326, %v327, %v330
    %v332 = vmul.f32 %v37, %v331
    %v333 = vmul.f32 %v38, %v331
    %v334 = vmul.f32 %v39, %v331
    %v335 = vmul.f32 %v40, %v331
    %v336 = vmul.f32 %v41, %v331
    %v337 = vmul.f32 %v42, %v331
    %v338 = vmul.f32 %v43, %v331
    %v339 = vmul.f32 %v44, %v331
    %v340 = vmul.f32 %v45, %v331
    %v341 = vmul.f32 %v46, %v331
    %v342 = vmul.f32 %v47, %v331
    %v343 = vmul.f32 %v48, %v331
    %v344 = vmul.f32 %v49, %v331
    %v345 = vmul.f32 %v50, %v331
    %v346 = vmul.f32 %v51, %v331
    %v347 = vmul.f32 %v52, %v331
    %v348 = vpack.c.bf16 %v333, %v332
    %v349 = vpack.c.bf16 %v335, %v334
    %v350 = vpack.c.bf16 %v337, %v336
    %v351 = vpack.c.bf16 %v339, %v338
    %v352 = vpack.c.bf16 %v341, %v340
    %v353 = vpack.c.bf16 %v343, %v342
    %v354 = vpack.c.bf16 %v345, %v344
    %v355 = vpack.c.bf16 %v347, %v346
    %v356 = vld [vmem:[%s2] sm:$0xf]
    %v357 = vld [vmem:[%s2 + $0x4] sm:$0xf]
    %v358 = vld [vmem:[%s2 + $0x8] sm:$0xf]
    %v359 = vld [vmem:[%s2 + $0xc] sm:$0xf]
    %v360 = vld [vmem:[%s2 + $0x10] sm:$0xf]
    %v361 = vld [vmem:[%s2 + $0x14] sm:$0xf]
    %v362 = vld [vmem:[%s2 + $0x18] sm:$0xf]
    %v363 = vld [vmem:[%s2 + $0x1c] sm:$0xf]
    %v364 = vld [vmem:[%s2 + $0x20] sm:$0xf]
    %v365 = vld [vmem:[%s2 + $0x24] sm:$0xf]
    %v366 = vld [vmem:[%s2 + $0x28] sm:$0xf]
    %v367 = vld [vmem:[%s2 + $0x2c] sm:$0xf]
    %v368 = vld [vmem:[%s2 + $0x30] sm:$0xf]
    %v369 = vld [vmem:[%s2 + $0x34] sm:$0xf]
    %v370 = vld [vmem:[%s2 + $0x38] sm:$0xf]
    %v371 = vld [vmem:[%s2 + $0x3c] sm:$0xf]
    %v372 = vld [vmem:[%s3] sm:$0xff]
    %v373 = vld [vmem:[%s3 + $0x8] sm:$0xff]
    %v374 = vld [vmem:[%s3 + $0x10] sm:$0xff]
    %v375 = vld [vmem:[%s3 + $0x18] sm:$0xff]
    %v376 = vld [vmem:[%s3 + $0x20] sm:$0xff]
    %v377 = vld [vmem:[%s3 + $0x28] sm:$0xff]
    %v378 = vld [vmem:[%s3 + $0x30] sm:$0xff]
    %v379 = vld [vmem:[%s3 + $0x38] sm:$0xff]
    %v380 = vld [vmem:[%s3 + $0x40] sm:$0xff]
    %v381 = vld [vmem:[%s3 + $0x48] sm:$0xff]
    %v382 = vld [vmem:[%s3 + $0x50] sm:$0xff]
    %v383 = vld [vmem:[%s3 + $0x58] sm:$0xff]
    %v384 = vld [vmem:[%s3 + $0x60] sm:$0xff]
    %v385 = vld [vmem:[%s3 + $0x68] sm:$0xff]
    %v386 = vld [vmem:[%s3 + $0x70] sm:$0xff]
    %v387 = vld [vmem:[%s3 + $0x78] sm:$0xff]
    %389 = vset.pattern.permute.xlu0 0
    %390 = vperm.xlu0 %389, %v372
    %v391 = vpop.permute.xlu0 %390
    %394 = vset.pattern.permute.xlu0 0
    %395 = vperm.xlu0 %394, %v373
    %v396 = vpop.permute.xlu0 %395
    %399 = vset.pattern.permute.xlu0 0
    %400 = vperm.xlu0 %399, %v374
    %v401 = vpop.permute.xlu0 %400
    %404 = vset.pattern.permute.xlu0 0
    %405 = vperm.xlu0 %404, %v375
    %v406 = vpop.permute.xlu0 %405
    %409 = vset.pattern.permute.xlu0 0
    %410 = vperm.xlu0 %409, %v376
    %v411 = vpop.permute.xlu0 %410
    %414 = vset.pattern.permute.xlu0 0
    %415 = vperm.xlu0 %414, %v377
    %v416 = vpop.permute.xlu0 %415
    %419 = vset.pattern.permute.xlu0 0
    %420 = vperm.xlu0 %419, %v378
    %v421 = vpop.permute.xlu0 %420
    %424 = vset.pattern.permute.xlu0 0
    %425 = vperm.xlu0 %424, %v379
    %v426 = vpop.permute.xlu0 %425
    %429 = vset.pattern.permute.xlu0 0
    %430 = vperm.xlu0 %429, %v380
    %v431 = vpop.permute.xlu0 %430
    %434 = vset.pattern.permute.xlu0 0
    %435 = vperm.xlu0 %434, %v381
    %v436 = vpop.permute.xlu0 %435
    %439 = vset.pattern.permute.xlu0 0
    %440 = vperm.xlu0 %439, %v382
    %v441 = vpop.permute.xlu0 %440
    %444 = vset.pattern.permute.xlu0 0
    %445 = vperm.xlu0 %444, %v383
    %v446 = vpop.permute.xlu0 %445
    %449 = vset.pattern.permute.xlu0 0
    %450 = vperm.xlu0 %449, %v384
    %v451 = vpop.permute.xlu0 %450
    %454 = vset.pattern.permute.xlu0 0
    %455 = vperm.xlu0 %454, %v385
    %v456 = vpop.permute.xlu0 %455
    %459 = vset.pattern.permute.xlu0 0
    %460 = vperm.xlu0 %459, %v386
    %v461 = vpop.permute.xlu0 %460
    %464 = vset.pattern.permute.xlu0 0
    %465 = vperm.xlu0 %464, %v387
    %v466 = vpop.permute.xlu0 %465
    %v484 = vunpack.c.l.b16 %v356
    %v485 = vunpack.c.l.b16 %v357
    %v486 = vunpack.c.l.b16 %v358
    %v487 = vunpack.c.l.b16 %v359
    %v488 = vunpack.c.l.b16 %v360
    %v489 = vunpack.c.l.b16 %v361
    %v490 = vunpack.c.l.b16 %v362
    %v491 = vunpack.c.l.b16 %v363
    %v492 = vunpack.c.l.b16 %v364
    %v493 = vunpack.c.l.b16 %v365
    %v494 = vunpack.c.l.b16 %v366
    %v495 = vunpack.c.l.b16 %v367
    %v496 = vunpack.c.l.b16 %v368
    %v497 = vunpack.c.l.b16 %v369
    %v498 = vunpack.c.l.b16 %v370
    %v499 = vunpack.c.l.b16 %v371
    %v500 = vpack.c.b16 %v485, %v484
    %v501 = vpack.c.b16 %v487, %v486
    %v502 = vpack.c.b16 %v489, %v488
    %v503 = vpack.c.b16 %v491, %v490
    %v504 = vpack.c.b16 %v493, %v492
    %v505 = vpack.c.b16 %v495, %v494
    %v506 = vpack.c.b16 %v497, %v496
    %v507 = vpack.c.b16 %v499, %v498
    %516 = vmatprep.subr.bf16.mxu0 0
    %517 = vmatpush1.bf16.msra.mxu0 %v355
    %518 = vmatprep.subr.bf16.mxu0 0
    %519 = vmatpush1.bf16.msra.mxu0 %v354
    %520 = vmatprep.subr.bf16.mxu0 0
    %521 = vmatpush1.bf16.msra.mxu0 %v353
    %522 = vmatprep.subr.bf16.mxu0 0
    %523 = vmatpush1.bf16.msra.mxu0 %v352
    %524 = vmatprep.subr.bf16.mxu0 0
    %525 = vmatpush1.bf16.msra.mxu0 %v351
    %526 = vmatprep.subr.bf16.mxu0 0
    %527 = vmatpush1.bf16.msra.mxu0 %v350
    %528 = vmatprep.subr.bf16.mxu0 0
    %529 = vmatpush1.bf16.msra.mxu0 %v349
    %530 = vmatprep.subr.bf16.mxu0 0
    %531 = vmatpush1.bf16.msra.mxu0 %v348
    %532 = vmatprep.subr.bf16.mxu0 0
    %533 = vmatpush2.bf16.msra.mxu0 0
    %534 = vmatprep.subr.bf16.mxu0 0
    %535 = vmatpush2.bf16.msra.mxu0 0
    %536 = vmatprep.subr.bf16.mxu0 0
    %537 = vmatpush2.bf16.msra.mxu0 0
    %538 = vmatprep.subr.bf16.mxu0 0
    %539 = vmatpush2.bf16.msra.mxu0 0
    %540 = vmatprep.subr.bf16.mxu0 0
    %541 = vmatpush2.bf16.msra.mxu0 0
    %542 = vmatprep.subr.bf16.mxu0 0
    %543 = vmatpush2.bf16.msra.mxu0 0
    %544 = vmatprep.subr.bf16.mxu0 0
    %545 = vmatpush2.bf16.msra.mxu0 0
    %546 = vmatprep.subr.bf16.mxu0 0
    %547 = vmatpush2.bf16.msra.mxu0 0
    %548 = vmatprep.mubr.bf16.mxu0 0
    %549 = vmatmul.mubr.bf16.gmra.mxu0 %v500
    %v550 = vpop.f32.mrf.mxu0
    %v551 = vadd.f32 %v391, %v550
    %v552 = vpop.f32.mrf.mxu0
    %v553 = vpop.f32.mrf.mxu0
    %v554 = vadd.f32 %v396, %v553
    %v555 = vpop.f32.mrf.mxu0
    %556 = vmatprep.mubr.bf16.mxu0 0
    %557 = vmatmul.mubr.bf16.gmra.mxu0 %v501
    %v558 = vpop.f32.mrf.mxu0
    %v559 = vadd.f32 %v401, %v558
    %v560 = vpop.f32.mrf.mxu0
    %v561 = vpop.f32.mrf.mxu0
    %v562 = vadd.f32 %v406, %v561
    %v563 = vpop.f32.mrf.mxu0
    %564 = vmatprep.mubr.bf16.mxu0 0
    %565 = vmatmul.mubr.bf16.gmra.mxu0 %v502
    %v566 = vpop.f32.mrf.mxu0
    %v567 = vadd.f32 %v411, %v566
    %v568 = vpop.f32.mrf.mxu0
    %v569 = vpop.f32.mrf.mxu0
    %v570 = vadd.f32 %v416, %v569
    %v571 = vpop.f32.mrf.mxu0
    %572 = vmatprep.mubr.bf16.mxu0 0
    %573 = vmatmul.mubr.bf16.gmra.mxu0 %v503
    %v574 = vpop.f32.mrf.mxu0
    %v575 = vadd.f32 %v421, %v574
    %v576 = vpop.f32.mrf.mxu0
    %v577 = vpop.f32.mrf.mxu0
    %v578 = vadd.f32 %v426, %v577
    %v579 = vpop.f32.mrf.mxu0
    %580 = vmatprep.mubr.bf16.mxu0 0
    %581 = vmatmul.mubr.bf16.gmra.mxu0 %v504
    %v582 = vpop.f32.mrf.mxu0
    %v583 = vadd.f32 %v431, %v582
    %v584 = vpop.f32.mrf.mxu0
    %v585 = vpop.f32.mrf.mxu0
    %v586 = vadd.f32 %v436, %v585
    %v587 = vpop.f32.mrf.mxu0
    %588 = vmatprep.mubr.bf16.mxu0 0
    %589 = vmatmul.mubr.bf16.gmra.mxu0 %v505
    %v590 = vpop.f32.mrf.mxu0
    %v591 = vadd.f32 %v441, %v590
    %v592 = vpop.f32.mrf.mxu0
    %v593 = vpop.f32.mrf.mxu0
    %v594 = vadd.f32 %v446, %v593
    %v595 = vpop.f32.mrf.mxu0
    %596 = vmatprep.mubr.bf16.mxu0 0
    %597 = vmatmul.mubr.bf16.gmra.mxu0 %v506
    %v598 = vpop.f32.mrf.mxu0
    %v599 = vadd.f32 %v451, %v598
    %v600 = vpop.f32.mrf.mxu0
    %v601 = vpop.f32.mrf.mxu0
    %v602 = vadd.f32 %v456, %v601
    %v603 = vpop.f32.mrf.mxu0
    %604 = vmatprep.mubr.bf16.mxu0 0
    %605 = vmatmul.mubr.bf16.gmra.mxu0 %v507
    %v606 = vpop.f32.mrf.mxu0
    %v607 = vadd.f32 %v461, %v606
    %v608 = vpop.f32.mrf.mxu0
    %v609 = vpop.f32.mrf.mxu0
    %v610 = vadd.f32 %v466, %v609
    %v611 = vpop.f32.mrf.mxu0
    %612 = vdwg.mxu0
    %v613 = vmax.f32 %v551, 0.0
    %v614 = vmax.f32 %v554, 0.0
    %v615 = vmax.f32 %v559, 0.0
    %v616 = vmax.f32 %v562, 0.0
    %v617 = vmax.f32 %v567, 0.0
    %v618 = vmax.f32 %v570, 0.0
    %v619 = vmax.f32 %v575, 0.0
    %v620 = vmax.f32 %v578, 0.0
    %v621 = vmax.f32 %v583, 0.0
    %v622 = vmax.f32 %v586, 0.0
    %v623 = vmax.f32 %v591, 0.0
    %v624 = vmax.f32 %v594, 0.0
    %v625 = vmax.f32 %v599, 0.0
    %v626 = vmax.f32 %v602, 0.0
    %v627 = vmax.f32 %v607, 0.0
    %v628 = vmax.f32 %v610, 0.0
    %v629 = vld [vmem:[%s4] sm:$0xff]
    %v630 = vld [vmem:[%s4 + $0x8] sm:$0xff]
    %v631 = vld [vmem:[%s4 + $0x10] sm:$0xff]
    %v632 = vld [vmem:[%s4 + $0x18] sm:$0xff]
    %v633 = vld [vmem:[%s4 + $0x20] sm:$0xff]
    %v634 = vld [vmem:[%s4 + $0x28] sm:$0xff]
    %v635 = vld [vmem:[%s4 + $0x30] sm:$0xff]
    %v636 = vld [vmem:[%s4 + $0x38] sm:$0xff]
    %v637 = vld [vmem:[%s4 + $0x40] sm:$0xff]
    %v638 = vld [vmem:[%s4 + $0x48] sm:$0xff]
    %v639 = vld [vmem:[%s4 + $0x50] sm:$0xff]
    %v640 = vld [vmem:[%s4 + $0x58] sm:$0xff]
    %v641 = vld [vmem:[%s4 + $0x60] sm:$0xff]
    %v642 = vld [vmem:[%s4 + $0x68] sm:$0xff]
    %v643 = vld [vmem:[%s4 + $0x70] sm:$0xff]
    %v644 = vld [vmem:[%s4 + $0x78] sm:$0xff]
    %646 = vset.pattern.permute.xlu0 0
    %647 = vperm.xlu0 %646, %v629
    %v648 = vpop.permute.xlu0 %647
    %651 = vset.pattern.permute.xlu0 0
    %652 = vperm.xlu0 %651, %v630
    %v653 = vpop.permute.xlu0 %652
    %656 = vset.pattern.permute.xlu0 0
    %657 = vperm.xlu0 %656, %v631
    %v658 = vpop.permute.xlu0 %657
    %661 = vset.pattern.permute.xlu0 0
    %662 = vperm.xlu0 %661, %v632
    %v663 = vpop.permute.xlu0 %662
    %666 = vset.pattern.permute.xlu0 0
    %667 = vperm.xlu0 %666, %v633
    %v668 = vpop.permute.xlu0 %667
    %671 = vset.pattern.permute.xlu0 0
    %672 = vperm.xlu0 %671, %v634
    %v673 = vpop.permute.xlu0 %672
    %676 = vset.pattern.permute.xlu0 0
    %677 = vperm.xlu0 %676, %v635
    %v678 = vpop.permute.xlu0 %677
    %681 = vset.pattern.permute.xlu0 0
    %682 = vperm.xlu0 %681, %v636
    %v683 = vpop.permute.xlu0 %682
    %686 = vset.pattern.permute.xlu0 0
    %687 = vperm.xlu0 %686, %v637
    %v688 = vpop.permute.xlu0 %687
    %691 = vset.pattern.permute.xlu0 0
    %692 = vperm.xlu0 %691, %v638
    %v693 = vpop.permute.xlu0 %692
    %696 = vset.pattern.permute.xlu0 0
    %697 = vperm.xlu0 %696, %v639
    %v698 = vpop.permute.xlu0 %697
    %701 = vset.pattern.permute.xlu0 0
    %702 = vperm.xlu0 %701, %v640
    %v703 = vpop.permute.xlu0 %702
    %706 = vset.pattern.permute.xlu0 0
    %707 = vperm.xlu0 %706, %v641
    %v708 = vpop.permute.xlu0 %707
    %711 = vset.pattern.permute.xlu0 0
    %712 = vperm.xlu0 %711, %v642
    %v713 = vpop.permute.xlu0 %712
    %716 = vset.pattern.permute.xlu0 0
    %717 = vperm.xlu0 %716, %v643
    %v718 = vpop.permute.xlu0 %717
    %721 = vset.pattern.permute.xlu0 0
    %722 = vperm.xlu0 %721, %v644
    %v723 = vpop.permute.xlu0 %722
    %v725 = vmul.f32 %v613, %v648
    %v726 = vmul.f32 %v614, %v653
    %v727 = vmul.f32 %v615, %v658
    %v728 = vmul.f32 %v616, %v663
    %v729 = vmul.f32 %v617, %v668
    %v730 = vmul.f32 %v618, %v673
    %v731 = vmul.f32 %v619, %v678
    %v732 = vmul.f32 %v620, %v683
    %v733 = vmul.f32 %v621, %v688
    %v734 = vmul.f32 %v622, %v693
    %v735 = vmul.f32 %v623, %v698
    %v736 = vmul.f32 %v624, %v703
    %v737 = vmul.f32 %v625, %v708
    %v738 = vmul.f32 %v626, %v713
    %v739 = vmul.f32 %v627, %v718
    %v740 = vmul.f32 %v628, %v723
    %v741 = vadd.f32 %v725, %v726
    %v742 = vadd.f32 %v741, %v727
    %v743 = vadd.f32 %v742, %v728
    %v744 = vadd.f32 %v743, %v729
    %v745 = vadd.f32 %v744, %v730
    %v746 = vadd.f32 %v745, %v731
    %v747 = vadd.f32 %v746, %v732
    %v748 = vadd.f32 %v747, %v733
    %v749 = vadd.f32 %v748, %v734
    %v750 = vadd.f32 %v749, %v735
    %v751 = vadd.f32 %v750, %v736
    %v752 = vadd.f32 %v751, %v737
    %v753 = vadd.f32 %v752, %v738
    %v754 = vadd.f32 %v753, %v739
    %v755 = vadd.f32 %v754, %v740
    %v756 = vrot.slane %v755, 4
    %v757 = vadd.f32 %v755, %v756
    %v758 = vrot.slane %v757, 2
    %v759 = vadd.f32 %v757, %v758
    %v760 = vrot.slane %v759, 1
    %v761 = vadd.f32 %v759, %v760
    %s762 = sld [smem:[#allocation2 + $0x1]]
    %v763 = vstv %s762
    %v764 = vadd.f32 %v761, %v763
    %v765 = vmax.f32 %v764, 0.0
    %v766 = vmul.f32 %v222, %v331
    %v767 = vmul.f32 %v331, %v331
    %v768 = vmul.f32 %v323, %v767
    %v769 = vadd.f32 %v766, %v768
    %s770 = sld [smem:[#allocation2]]
    %v771 = vstv %s770
    %v772 = vadd.f32 %v769, %v771
    %v773 = vmul.f32 %v765, %v765
    %v774 = vmul.f32 %v773, 10.0
    %v775 = vadd.f32 %v772, %v774
    %776 = vst [vmem:[%s6] sm:$0x1] %v775
    // Predicated region
    $region30: #{lag_insulator_forward.1} parent=1 // pred_check
      _
    $region31: #{lag_insulator_forward.1} parent=1 // pred_check_branch
      %778 = sbr.rel (0) target = $region33
    $region32: #{lag_insulator_forward.1} parent=1 // pred_region
      _
    $region33: #{lag_insulator_forward.1} parent=1 // pred_fallthru
      _
    // Predicated region
    $region34: #{lag_insulator_forward.1} parent=1 // pred_check
      _
    $region35: #{lag_insulator_forward.1} parent=1 // pred_check_branch
      %780 = sbr.rel (0) target = $region37
    $region36: #{lag_insulator_forward.1} parent=1 // pred_region
      _
    $region37: #{lag_insulator_forward.1} parent=1 // pred_fallthru
      _
    %781 = vsyncpa [#allocation3], 1

</llo_original>
